<compile_context>
chip_gen: v7x
topology: tpu7x:2x2x1
jax: 0.10.0
libtpu: 0.0.40
codegen_flags: <defaults>
</compile_context>

<pallas_src>
import jax
import jax.numpy as jnp
from jax.experimental import pallas as pl
from jax.experimental.pallas import tpu as pltpu


def _round_down_mult(x, m):
    return (x // m) * m


def _tpu_generation_params():
    """(target tile bytes, VMEM limit bytes, is_v5) per TPU generation."""
    kind = ""
    try:
        kind = jax.devices()[0].device_kind.lower()
    except Exception:
        pass
    if "v7" in kind:
        # 64 MiB VMEM per TensorCore: smaller tiles, conservative limit.
        return (2 << 20), (40 << 20), False
    if "v5" in kind:
        # v5e: 128 MiB physical, 16 MiB scoped default -> raise explicitly.
        return (3 << 20), (48 << 20), True
    # v6e / default: 128 MiB physical, plenty of headroom.
    return (4 << 20), (64 << 20), False


# ---------------------------------------------------------------------------
# Kernels
# ---------------------------------------------------------------------------
def _small_c_kernel(C):
    """VPU path for C < 8.  x/o tiles: (BN, C, TS, 128); w:(C,C), b:(C,) in SMEM."""

    def kernel(w_ref, b_ref, x_ref, o_ref):
        for o in range(C):
            # scalar (SMEM) * plane (VMEM) broadcast FMAs; identity already
            # folded into w, so no separate residual add is needed.
            acc = x_ref[:, 0].astype(jnp.float32) * w_ref[o, 0]
            for i in range(1, C):
                acc = acc + x_ref[:, i].astype(jnp.float32) * w_ref[o, i]
            acc = acc + b_ref[o]
            o_ref[:, o] = acc.astype(o_ref.dtype)

    return kernel


def _mxu_kernel(use_bf16):
    """MXU path: x/o tiles (C, THW) lane-dense; w:(C,C), b:(C,1) in VMEM."""

    def kernel(x_ref, w_ref, b_ref, o_ref):
        cdt = jnp.bfloat16 if use_bf16 else jnp.float32
        lhs = w_ref[...].astype(cdt)                       # (C, C), identity folded
        rhs = x_ref[...].astype(cdt)                       # (C, THW)
        acc = jnp.dot(lhs, rhs, preferred_element_type=jnp.float32)
        acc = acc + b_ref[...]                             # (C, 1) broadcast on lanes
        o_ref[...] = acc.astype(o_ref.dtype)

    return kernel


# ---------------------------------------------------------------------------
# Wrapper
# ---------------------------------------------------------------------------
def residual_forward(x_nchw, weight, bias, *, mxu_bf16=None):
    """Residual(1x1 conv): y = conv1x1(x) + x  ==  (W + I) @ x + b  per pixel.

    x_nchw : (N, C, H, W)
    weight : (C_out=C, C_in=C)   (PyTorch 1x1 conv weight, 1x1 dims squeezed)
    bias   : (C,)
    """
    N, C, H, W = x_nchw.shape
    HW = H * W
    dtype = x_nchw.dtype
    itemsize = jnp.dtype(dtype).itemsize

    target_bytes, vmem_cap, is_v5 = _tpu_generation_params()

    # Fold the residual identity into the weight.
    w_eff = weight.astype(jnp.float32) + jnp.eye(C, dtype=jnp.float32)
    b_f32 = bias.astype(jnp.float32)

    if mxu_bf16 is None:
        # bf16 activations -> bf16 MXU operands (standard mixed precision).
        # On v5e, an f32 matmul with large C is emulated in multiple bf16 MXU
        # passes and becomes compute-bound, so drop operands to bf16 there too.
        mxu_bf16 = (dtype == jnp.bfloat16) or (is_v5 and dtype == jnp.float32 and C >= 256)

    small_c = (C < 8) and (HW % 128 == 0)

    if small_c:
        # ------------------------------------------------------------------
        # Path A: channel planes fully packed as (S, 128) tiles, VPU FMAs.
        # ------------------------------------------------------------------
        S = HW // 128
        plane_row_bytes = C * 128 * itemsize          # one s-row across channels
        img_bytes = S * plane_row_bytes

        if img_bytes <= target_bytes:
            tile_s = S
            bn = max(1, min(N, target_bytes // max(1, img_bytes)))
        else:
            bn = 1
            tile_s = max(8, _round_down_mult(target_bytes // plane_row_bytes, 8))
            tile_s = min(tile_s, S)

        def _steps(bn_, ts_):
            return pl.cdiv(N, bn_) * pl.cdiv(S, ts_)

        # Prefer >= 4 grid steps (2 TCs x double buffering) when the problem is
        # big enough, without shrinking tiles below ~256 KiB.
        while _steps(bn, tile_s) < 4:
            if bn > 1:
                bn = max(1, bn // 2)
            elif tile_s > 8 and bn * C * tile_s * 128 * itemsize > (256 << 10):
                tile_s = max(8, _round_down_mult(tile_s // 2, 8))
            else:
                break

        # Fit the (double-buffered) tiles + f32 working set under the VMEM cap
        # by shrinking the tile, never by lying about the limit.
        def _vmem_needed(bn_, ts_):
            tile_elems = bn_ * C * ts_ * 128
            io = 2 * 2 * tile_elems * itemsize         # in + out, double-buffered
            work = 2 * bn_ * ts_ * 128 * 4             # f32 acc + one cast plane
            return io + work + (2 << 20)

        while _vmem_needed(bn, tile_s) > vmem_cap:
            if bn > 1:
                bn = max(1, bn // 2)
            elif tile_s > 8:
                tile_s = max(8, _round_down_mult(tile_s // 2, 8))
            else:
                break

        x4 = x_nchw.reshape(N, C, S, 128)              # pure reshape, no HBM pass
        grid = (pl.cdiv(N, bn), pl.cdiv(S, tile_s))

        out4 = pl.pallas_call(
            _small_c_kernel(C),
            out_shape=jax.ShapeDtypeStruct((N, C, S, 128), dtype),
            grid=grid,
            in_specs=[
                pl.BlockSpec(memory_space=pltpu.MemorySpace.SMEM),   # w_eff (C, C)
                pl.BlockSpec(memory_space=pltpu.MemorySpace.SMEM),   # bias  (C,)
                pl.BlockSpec((bn, C, tile_s, 128), lambda n, t: (n, 0, t, 0)),
            ],
            out_specs=pl.BlockSpec((bn, C, tile_s, 128), lambda n, t: (n, 0, t, 0)),
            compiler_params=pltpu.CompilerParams(
                dimension_semantics=("parallel", "parallel"),
                vmem_limit_bytes=int(vmem_cap),
            ),
        )(w_eff, b_f32, x4)
        return out4.reshape(N, C, H, W)

    # ----------------------------------------------------------------------
    # Path B: general C — MXU matmul, C on sublanes, H*W lane-dense.
    # ----------------------------------------------------------------------
    x3 = x_nchw.reshape(N, C, HW)                       # pure reshape

    tile_hw = max(128, _round_down_mult(target_bytes // (C * itemsize), 128))
    if tile_hw >= HW:
        tile_hw = HW                                    # full extent is always legal
    else:
        # Keep >= 4 grid steps when possible without going below ~256 KiB tiles.
        while (N * pl.cdiv(HW, tile_hw) < 4 and tile_hw > 128
               and C * tile_hw * itemsize > (256 << 10)):
            nt = max(128, _round_down_mult(tile_hw // 2, 128))
            if nt == tile_hw:
                break
            tile_hw = nt

    def _vmem_needed_b(thw):
        io = 2 * 2 * C * thw * itemsize                 # in + out, double-buffered
        work = 2 * C * thw * 4                          # f32 acc (+ cast)
        wb = C * C * 4 + C * 4
        return io + work + wb + (2 << 20)

    while _vmem_needed_b(tile_hw) > vmem_cap and tile_hw > 128:
        tile_hw = max(128, _round_down_mult(tile_hw // 2, 128))

    grid = (N, pl.cdiv(HW, tile_hw))                    # ragged tail: masked stores

    out3 = pl.pallas_call(
        _mxu_kernel(mxu_bf16),
        out_shape=jax.ShapeDtypeStruct((N, C, HW), dtype),
        grid=grid,
        in_specs=[
            pl.BlockSpec((None, C, tile_hw), lambda n, t: (n, 0, t)),
            pl.BlockSpec((C, C), lambda n, t: (0, 0)),
            pl.BlockSpec((C, 1), lambda n, t: (0, 0)),
        ],
        out_specs=pl.BlockSpec((None, C, tile_hw), lambda n, t: (n, 0, t)),
        compiler_params=pltpu.CompilerParams(
            dimension_semantics=("parallel", "parallel"),
            vmem_limit_bytes=int(vmem_cap),
        ),
    )(x3, w_eff, b_f32.reshape(C, 1))
    return out3.reshape(N, C, H, W)


if __name__ == "__main__":
    key = jax.random.PRNGKey(0)
    kx, kw, kb = jax.random.split(key, 3)

    N, C, H, W = 2, 4, 16, 16
    x = jax.random.normal(kx, (N, C, H, W), dtype=jnp.float32)
    # deterministic "fn" parameters: 1x1 conv weight (C_out, C_in) and bias (C,)
    weight = jax.random.normal(kw, (C, C), dtype=jnp.float32) * 0.1
    bias = jax.random.normal(kb, (C,), dtype=jnp.float32) * 0.1

    out = jax.block_until_ready(residual_forward(x, weight, bias))

    # reference: fn(x) + x  in plain JAX (NCHW 1x1 conv == einsum)
    ref = jnp.einsum("oc,nchw->nohw", weight, x) + bias[None, :, None, None] + x
    assert out.shape == (N, C, H, W)
    assert jnp.allclose(out, ref, atol=1e-5, rtol=1e-5)

    print("KERNEL_OK")
</pallas_src>

<mosaic_0001>
module attributes {stable_mosaic.version = 11 : i64} {
  func.func @kernel(%arg0: i32, %arg1: i32, %arg2: memref<4x4xf32, #tpu.memory_space<smem>>, %arg3: memref<4xf32, #tpu.memory_space<smem>>, %arg4: memref<1x4x2x128xf32, #tpu.memory_space<vmem>>, %arg5: memref<1x4x2x128xf32, #tpu.memory_space<vmem>>) attributes {dimension_semantics = [#tpu.dimension_semantics<parallel>, #tpu.dimension_semantics<parallel>], iteration_bounds = array<i64: 2, 1>, scalar_prefetch = 0 : i64, scratch_operands = 0 : i64, tpu.core_type = #tpu.core_type<tc>, window_params = [{transform_indices = @transform_0, window_bounds = array<i64: 4, 4>}, {transform_indices = @transform_1, window_bounds = array<i64: 4>}, {transform_indices = @transform_2, window_bounds = array<i64: 1, 4, 2, 128>}, {transform_indices = @transform_3, window_bounds = array<i64: 1, 4, 2, 128>}]} {
    %c0 = arith.constant 0 : index
    %c0_0 = arith.constant 0 : index
    %c0_1 = arith.constant 0 : index
    %c0_2 = arith.constant 0 : index
    %0 = vector.load %arg4[%c0, %c0_0, %c0_1, %c0_2] : memref<1x4x2x128xf32, #tpu.memory_space<vmem>>, vector<1x1x2x128xf32>
    %1 = vector.shape_cast %0 : vector<1x1x2x128xf32> to vector<1x2x128xf32>
    %c0_3 = arith.constant 0 : index
    %c0_4 = arith.constant 0 : index
    %2 = memref.load %arg2[%c0_3, %c0_4] : memref<4x4xf32, #tpu.memory_space<smem>>
    %3 = vector.broadcast %2 : f32 to vector<1x2x128xf32>
    %4 = arith.mulf %1, %3 : vector<1x2x128xf32>
    %c0_5 = arith.constant 0 : index
    %c1 = arith.constant 1 : index
    %c0_6 = arith.constant 0 : index
    %c0_7 = arith.constant 0 : index
    %5 = vector.load %arg4[%c0_5, %c1, %c0_6, %c0_7] : memref<1x4x2x128xf32, #tpu.memory_space<vmem>>, vector<1x1x2x128xf32>
    %6 = vector.shape_cast %5 : vector<1x1x2x128xf32> to vector<1x2x128xf32>
    %c0_8 = arith.constant 0 : index
    %c1_9 = arith.constant 1 : index
    %7 = memref.load %arg2[%c0_8, %c1_9] : memref<4x4xf32, #tpu.memory_space<smem>>
    %8 = vector.broadcast %7 : f32 to vector<1x2x128xf32>
    %9 = arith.mulf %6, %8 : vector<1x2x128xf32>
    %10 = arith.addf %4, %9 : vector<1x2x128xf32>
    %c0_10 = arith.constant 0 : index
    %c2 = arith.constant 2 : index
    %c0_11 = arith.constant 0 : index
    %c0_12 = arith.constant 0 : index
    %11 = vector.load %arg4[%c0_10, %c2, %c0_11, %c0_12] : memref<1x4x2x128xf32, #tpu.memory_space<vmem>>, vector<1x1x2x128xf32>
    %12 = vector.shape_cast %11 : vector<1x1x2x128xf32> to vector<1x2x128xf32>
    %c0_13 = arith.constant 0 : index
    %c2_14 = arith.constant 2 : index
    %13 = memref.load %arg2[%c0_13, %c2_14] : memref<4x4xf32, #tpu.memory_space<smem>>
    %14 = vector.broadcast %13 : f32 to vector<1x2x128xf32>
    %15 = arith.mulf %12, %14 : vector<1x2x128xf32>
    %16 = arith.addf %10, %15 : vector<1x2x128xf32>
    %c0_15 = arith.constant 0 : index
    %c3 = arith.constant 3 : index
    %c0_16 = arith.constant 0 : index
    %c0_17 = arith.constant 0 : index
    %17 = vector.load %arg4[%c0_15, %c3, %c0_16, %c0_17] : memref<1x4x2x128xf32, #tpu.memory_space<vmem>>, vector<1x1x2x128xf32>
    %18 = vector.shape_cast %17 : vector<1x1x2x128xf32> to vector<1x2x128xf32>
    %c0_18 = arith.constant 0 : index
    %c3_19 = arith.constant 3 : index
    %19 = memref.load %arg2[%c0_18, %c3_19] : memref<4x4xf32, #tpu.memory_space<smem>>
    %20 = vector.broadcast %19 : f32 to vector<1x2x128xf32>
    %21 = arith.mulf %18, %20 : vector<1x2x128xf32>
    %22 = arith.addf %16, %21 : vector<1x2x128xf32>
    %c0_20 = arith.constant 0 : index
    %23 = memref.load %arg3[%c0_20] : memref<4xf32, #tpu.memory_space<smem>>
    %24 = vector.broadcast %23 : f32 to vector<1x2x128xf32>
    %25 = arith.addf %22, %24 : vector<1x2x128xf32>
    %c0_21 = arith.constant 0 : index
    %c0_22 = arith.constant 0 : index
    %c0_23 = arith.constant 0 : index
    %c0_24 = arith.constant 0 : index
    %26 = vector.load %arg5[%c0_21, %c0_22, %c0_23, %c0_24] : memref<1x4x2x128xf32, #tpu.memory_space<vmem>>, vector<1x1x2x128xf32>
    %27 = vector.shape_cast %26 : vector<1x1x2x128xf32> to vector<1x2x128xf32>
    %28 = vector.shape_cast %25 : vector<1x2x128xf32> to vector<1x1x2x128xf32>
    tpu.vector_store %arg5[%c0_21, %c0_22, %c0_23, %c0_24], %28 {strides = array<i32>} : memref<1x4x2x128xf32, #tpu.memory_space<vmem>>, vector<1x1x2x128xf32>,
    %c0_25 = arith.constant 0 : index
    %c0_26 = arith.constant 0 : index
    %c0_27 = arith.constant 0 : index
    %c0_28 = arith.constant 0 : index
    %29 = vector.load %arg4[%c0_25, %c0_26, %c0_27, %c0_28] : memref<1x4x2x128xf32, #tpu.memory_space<vmem>>, vector<1x1x2x128xf32>
    %30 = vector.shape_cast %29 : vector<1x1x2x128xf32> to vector<1x2x128xf32>
    %c1_29 = arith.constant 1 : index
    %c0_30 = arith.constant 0 : index
    %31 = memref.load %arg2[%c1_29, %c0_30] : memref<4x4xf32, #tpu.memory_space<smem>>
    %32 = vector.broadcast %31 : f32 to vector<1x2x128xf32>
    %33 = arith.mulf %30, %32 : vector<1x2x128xf32>
    %c0_31 = arith.constant 0 : index
    %c1_32 = arith.constant 1 : index
    %c0_33 = arith.constant 0 : index
    %c0_34 = arith.constant 0 : index
    %34 = vector.load %arg4[%c0_31, %c1_32, %c0_33, %c0_34] : memref<1x4x2x128xf32, #tpu.memory_space<vmem>>, vector<1x1x2x128xf32>
    %35 = vector.shape_cast %34 : vector<1x1x2x128xf32> to vector<1x2x128xf32>
    %c1_35 = arith.constant 1 : index
    %c1_36 = arith.constant 1 : index
    %36 = memref.load %arg2[%c1_35, %c1_36] : memref<4x4xf32, #tpu.memory_space<smem>>
    %37 = vector.broadcast %36 : f32 to vector<1x2x128xf32>
    %38 = arith.mulf %35, %37 : vector<1x2x128xf32>
    %39 = arith.addf %33, %38 : vector<1x2x128xf32>
    %c0_37 = arith.constant 0 : index
    %c2_38 = arith.constant 2 : index
    %c0_39 = arith.constant 0 : index
    %c0_40 = arith.constant 0 : index
    %40 = vector.load %arg4[%c0_37, %c2_38, %c0_39, %c0_40] : memref<1x4x2x128xf32, #tpu.memory_space<vmem>>, vector<1x1x2x128xf32>
    %41 = vector.shape_cast %40 : vector<1x1x2x128xf32> to vector<1x2x128xf32>
    %c1_41 = arith.constant 1 : index
    %c2_42 = arith.constant 2 : index
    %42 = memref.load %arg2[%c1_41, %c2_42] : memref<4x4xf32, #tpu.memory_space<smem>>
    %43 = vector.broadcast %42 : f32 to vector<1x2x128xf32>
    %44 = arith.mulf %41, %43 : vector<1x2x128xf32>
    %45 = arith.addf %39, %44 : vector<1x2x128xf32>
    %c0_43 = arith.constant 0 : index
    %c3_44 = arith.constant 3 : index
    %c0_45 = arith.constant 0 : index
    %c0_46 = arith.constant 0 : index
    %46 = vector.load %arg4[%c0_43, %c3_44, %c0_45, %c0_46] : memref<1x4x2x128xf32, #tpu.memory_space<vmem>>, vector<1x1x2x128xf32>
    %47 = vector.shape_cast %46 : vector<1x1x2x128xf32> to vector<1x2x128xf32>
    %c1_47 = arith.constant 1 : index
    %c3_48 = arith.constant 3 : index
    %48 = memref.load %arg2[%c1_47, %c3_48] : memref<4x4xf32, #tpu.memory_space<smem>>
    %49 = vector.broadcast %48 : f32 to vector<1x2x128xf32>
    %50 = arith.mulf %47, %49 : vector<1x2x128xf32>
    %51 = arith.addf %45, %50 : vector<1x2x128xf32>
    %c1_49 = arith.constant 1 : index
    %52 = memref.load %arg3[%c1_49] : memref<4xf32, #tpu.memory_space<smem>>
    %53 = vector.broadcast %52 : f32 to vector<1x2x128xf32>
    %54 = arith.addf %51, %53 : vector<1x2x128xf32>
    %c0_50 = arith.constant 0 : index
    %c1_51 = arith.constant 1 : index
    %c0_52 = arith.constant 0 : index
    %c0_53 = arith.constant 0 : index
    %55 = vector.load %arg5[%c0_50, %c1_51, %c0_52, %c0_53] : memref<1x4x2x128xf32, #tpu.memory_space<vmem>>, vector<1x1x2x128xf32>
    %56 = vector.shape_cast %55 : vector<1x1x2x128xf32> to vector<1x2x128xf32>
    %57 = vector.shape_cast %54 : vector<1x2x128xf32> to vector<1x1x2x128xf32>
    tpu.vector_store %arg5[%c0_50, %c1_51, %c0_52, %c0_53], %57 {strides = array<i32>} : memref<1x4x2x128xf32, #tpu.memory_space<vmem>>, vector<1x1x2x128xf32>,
    %c0_54 = arith.constant 0 : index
    %c0_55 = arith.constant 0 : index
    %c0_56 = arith.constant 0 : index
    %c0_57 = arith.constant 0 : index
    %58 = vector.load %arg4[%c0_54, %c0_55, %c0_56, %c0_57] : memref<1x4x2x128xf32, #tpu.memory_space<vmem>>, vector<1x1x2x128xf32>
    %59 = vector.shape_cast %58 : vector<1x1x2x128xf32> to vector<1x2x128xf32>
    %c2_58 = arith.constant 2 : index
    %c0_59 = arith.constant 0 : index
    %60 = memref.load %arg2[%c2_58, %c0_59] : memref<4x4xf32, #tpu.memory_space<smem>>
    %61 = vector.broadcast %60 : f32 to vector<1x2x128xf32>
    %62 = arith.mulf %59, %61 : vector<1x2x128xf32>
    %c0_60 = arith.constant 0 : index
    %c1_61 = arith.constant 1 : index
    %c0_62 = arith.constant 0 : index
    %c0_63 = arith.constant 0 : index
    %63 = vector.load %arg4[%c0_60, %c1_61, %c0_62, %c0_63] : memref<1x4x2x128xf32, #tpu.memory_space<vmem>>, vector<1x1x2x128xf32>
    %64 = vector.shape_cast %63 : vector<1x1x2x128xf32> to vector<1x2x128xf32>
    %c2_64 = arith.constant 2 : index
    %c1_65 = arith.constant 1 : index
    %65 = memref.load %arg2[%c2_64, %c1_65] : memref<4x4xf32, #tpu.memory_space<smem>>
    %66 = vector.broadcast %65 : f32 to vector<1x2x128xf32>
    %67 = arith.mulf %64, %66 : vector<1x2x128xf32>
    %68 = arith.addf %62, %67 : vector<1x2x128xf32>
    %c0_66 = arith.constant 0 : index
    %c2_67 = arith.constant 2 : index
    %c0_68 = arith.constant 0 : index
    %c0_69 = arith.constant 0 : index
    %69 = vector.load %arg4[%c0_66, %c2_67, %c0_68, %c0_69] : memref<1x4x2x128xf32, #tpu.memory_space<vmem>>, vector<1x1x2x128xf32>
    %70 = vector.shape_cast %69 : vector<1x1x2x128xf32> to vector<1x2x128xf32>
    %c2_70 = arith.constant 2 : index
    %c2_71 = arith.constant 2 : index
    %71 = memref.load %arg2[%c2_70, %c2_71] : memref<4x4xf32, #tpu.memory_space<smem>>
    %72 = vector.broadcast %71 : f32 to vector<1x2x128xf32>
    %73 = arith.mulf %70, %72 : vector<1x2x128xf32>
    %74 = arith.addf %68, %73 : vector<1x2x128xf32>
    %c0_72 = arith.constant 0 : index
    %c3_73 = arith.constant 3 : index
    %c0_74 = arith.constant 0 : index
    %c0_75 = arith.constant 0 : index
    %75 = vector.load %arg4[%c0_72, %c3_73, %c0_74, %c0_75] : memref<1x4x2x128xf32, #tpu.memory_space<vmem>>, vector<1x1x2x128xf32>
    %76 = vector.shape_cast %75 : vector<1x1x2x128xf32> to vector<1x2x128xf32>
    %c2_76 = arith.constant 2 : index
    %c3_77 = arith.constant 3 : index
    %77 = memref.load %arg2[%c2_76, %c3_77] : memref<4x4xf32, #tpu.memory_space<smem>>
    %78 = vector.broadcast %77 : f32 to vector<1x2x128xf32>
    %79 = arith.mulf %76, %78 : vector<1x2x128xf32>
    %80 = arith.addf %74, %79 : vector<1x2x128xf32>
    %c2_78 = arith.constant 2 : index
    %81 = memref.load %arg3[%c2_78] : memref<4xf32, #tpu.memory_space<smem>>
    %82 = vector.broadcast %81 : f32 to vector<1x2x128xf32>
    %83 = arith.addf %80, %82 : vector<1x2x128xf32>
    %c0_79 = arith.constant 0 : index
    %c2_80 = arith.constant 2 : index
    %c0_81 = arith.constant 0 : index
    %c0_82 = arith.constant 0 : index
    %84 = vector.load %arg5[%c0_79, %c2_80, %c0_81, %c0_82] : memref<1x4x2x128xf32, #tpu.memory_space<vmem>>, vector<1x1x2x128xf32>
    %85 = vector.shape_cast %84 : vector<1x1x2x128xf32> to vector<1x2x128xf32>
    %86 = vector.shape_cast %83 : vector<1x2x128xf32> to vector<1x1x2x128xf32>
    tpu.vector_store %arg5[%c0_79, %c2_80, %c0_81, %c0_82], %86 {strides = array<i32>} : memref<1x4x2x128xf32, #tpu.memory_space<vmem>>, vector<1x1x2x128xf32>,
    %c0_83 = arith.constant 0 : index
    %c0_84 = arith.constant 0 : index
    %c0_85 = arith.constant 0 : index
    %c0_86 = arith.constant 0 : index
    %87 = vector.load %arg4[%c0_83, %c0_84, %c0_85, %c0_86] : memref<1x4x2x128xf32, #tpu.memory_space<vmem>>, vector<1x1x2x128xf32>
    %88 = vector.shape_cast %87 : vector<1x1x2x128xf32> to vector<1x2x128xf32>
    %c3_87 = arith.constant 3 : index
    %c0_88 = arith.constant 0 : index
    %89 = memref.load %arg2[%c3_87, %c0_88] : memref<4x4xf32, #tpu.memory_space<smem>>
    %90 = vector.broadcast %89 : f32 to vector<1x2x128xf32>
    %91 = arith.mulf %88, %90 : vector<1x2x128xf32>
    %c0_89 = arith.constant 0 : index
    %c1_90 = arith.constant 1 : index
    %c0_91 = arith.constant 0 : index
    %c0_92 = arith.constant 0 : index
    %92 = vector.load %arg4[%c0_89, %c1_90, %c0_91, %c0_92] : memref<1x4x2x128xf32, #tpu.memory_space<vmem>>, vector<1x1x2x128xf32>
    %93 = vector.shape_cast %92 : vector<1x1x2x128xf32> to vector<1x2x128xf32>
    %c3_93 = arith.constant 3 : index
    %c1_94 = arith.constant 1 : index
    %94 = memref.load %arg2[%c3_93, %c1_94] : memref<4x4xf32, #tpu.memory_space<smem>>
    %95 = vector.broadcast %94 : f32 to vector<1x2x128xf32>
    %96 = arith.mulf %93, %95 : vector<1x2x128xf32>
    %97 = arith.addf %91, %96 : vector<1x2x128xf32>
    %c0_95 = arith.constant 0 : index
    %c2_96 = arith.constant 2 : index
    %c0_97 = arith.constant 0 : index
    %c0_98 = arith.constant 0 : index
    %98 = vector.load %arg4[%c0_95, %c2_96, %c0_97, %c0_98] : memref<1x4x2x128xf32, #tpu.memory_space<vmem>>, vector<1x1x2x128xf32>
    %99 = vector.shape_cast %98 : vector<1x1x2x128xf32> to vector<1x2x128xf32>
    %c3_99 = arith.constant 3 : index
    %c2_100 = arith.constant 2 : index
    %100 = memref.load %arg2[%c3_99, %c2_100] : memref<4x4xf32, #tpu.memory_space<smem>>
    %101 = vector.broadcast %100 : f32 to vector<1x2x128xf32>
    %102 = arith.mulf %99, %101 : vector<1x2x128xf32>
    %103 = arith.addf %97, %102 : vector<1x2x128xf32>
    %c0_101 = arith.constant 0 : index
    %c3_102 = arith.constant 3 : index
    %c0_103 = arith.constant 0 : index
    %c0_104 = arith.constant 0 : index
    %104 = vector.load %arg4[%c0_101, %c3_102, %c0_103, %c0_104] : memref<1x4x2x128xf32, #tpu.memory_space<vmem>>, vector<1x1x2x128xf32>
    %105 = vector.shape_cast %104 : vector<1x1x2x128xf32> to vector<1x2x128xf32>
    %c3_105 = arith.constant 3 : index
    %c3_106 = arith.constant 3 : index
    %106 = memref.load %arg2[%c3_105, %c3_106] : memref<4x4xf32, #tpu.memory_space<smem>>
    %107 = vector.broadcast %106 : f32 to vector<1x2x128xf32>
    %108 = arith.mulf %105, %107 : vector<1x2x128xf32>
    %109 = arith.addf %103, %108 : vector<1x2x128xf32>
    %c3_107 = arith.constant 3 : index
    %110 = memref.load %arg3[%c3_107] : memref<4xf32, #tpu.memory_space<smem>>
    %111 = vector.broadcast %110 : f32 to vector<1x2x128xf32>
    %112 = arith.addf %109, %111 : vector<1x2x128xf32>
    %c0_108 = arith.constant 0 : index
    %c3_109 = arith.constant 3 : index
    %c0_110 = arith.constant 0 : index
    %c0_111 = arith.constant 0 : index
    %113 = vector.load %arg5[%c0_108, %c3_109, %c0_110, %c0_111] : memref<1x4x2x128xf32, #tpu.memory_space<vmem>>, vector<1x1x2x128xf32>
    %114 = vector.shape_cast %113 : vector<1x1x2x128xf32> to vector<1x2x128xf32>
    %115 = vector.shape_cast %112 : vector<1x2x128xf32> to vector<1x1x2x128xf32>
    tpu.vector_store %arg5[%c0_108, %c3_109, %c0_110, %c0_111], %115 {strides = array<i32>} : memref<1x4x2x128xf32, #tpu.memory_space<vmem>>, vector<1x1x2x128xf32>,
    return
  }
  func.func @transform_0(%arg0: i32, %arg1: i32) -> (i32, i32) {
    %c0_i32 = arith.constant 0 : i32
    %c0_i32_0 = arith.constant 0 : i32
    %c0_i32_1 = arith.constant 0 : i32
    return %c0_i32, %c0_i32_0 : i32, i32
  }
  func.func @transform_1(%arg0: i32, %arg1: i32) -> i32 {
    %c0_i32 = arith.constant 0 : i32
    %c0_i32_0 = arith.constant 0 : i32
    return %c0_i32 : i32
  }
  func.func @transform_2(%arg0: i32, %arg1: i32) -> (i32, i32, i32, i32) {
    %c0_i32 = arith.constant 0 : i32
    %c0_i32_0 = arith.constant 0 : i32
    %c0_i32_1 = arith.constant 0 : i32
    return %arg0, %c0_i32, %arg1, %c0_i32_0 : i32, i32, i32, i32
  }
  func.func @transform_3(%arg0: i32, %arg1: i32) -> (i32, i32, i32, i32) {
    %c0_i32 = arith.constant 0 : i32
    %c0_i32_0 = arith.constant 0 : i32
    %c0_i32_1 = arith.constant 0 : i32
    return %arg0, %c0_i32, %arg1, %c0_i32_0 : i32, i32, i32, i32
  }
}

</mosaic_0001>

<llo_original>
// kernel: tpu_custom_call.1
$region0: #{tpu_custom_call.1}
  #allocation0 [shape = 'u32[]', space=smem, size = 0x4, offset = 0x4, fixed_abs, tag = 'smem constant byte address 0x4 - core index']
  #allocation1 [shape = 'u32[144,128]{1,0:T(1,128)}', space=vmem, size = 0x12000, scoped, tag = 'internal scratch']
  %s0 = inlined_call_operand.hbm [shape: f32[4,4], index: 0, kind: input, shape index: {}]
  %s1 = inlined_call_operand.hbm [shape: f32[4], index: 1, kind: input, shape index: {}]
  %s2 = inlined_call_operand.hbm [shape: f32[2,4,2,128], index: 2, kind: input, shape index: {}]
  %s3 = inlined_call_operand.hbm [shape: f32[2,4,2,128], index: 3, kind: output, shape index: {}]
  %s4 = sld [smem:[#allocation0]]
  $region57: #{tpu_custom_call.1} parent=0
    _
  %s6 = ssub.s32 1, %s4
  %s7 = scalar_select 0, %s6, %s4
  $region1: #{tpu_custom_call.1} parent=0
    #allocation2 [shape = 'u8[2048]{0}', space=smem, size = 0x800, scoped, tag = 'input window, operand 0, single buffered']
    #allocation3 [shape = 's32[2]{0}', space=sflag, size = 0x8, scoped, tag = 'scoped memory for tpu_custom_call.1']
    #allocation4 [shape = 's32[2]{0}', space=sflag, size = 0x8, scoped, tag = 'scoped memory for tpu_custom_call.1']
    #allocation5 [shape = 's32[2]{0}', space=sflag, size = 0x8, scoped, tag = 'scoped memory for tpu_custom_call.1']
    #allocation6 [shape = 'u8[512]{0}', space=smem, size = 0x200, scoped, tag = 'input window, operand 1, single buffered']
    #allocation7 [shape = 's32[1]{0}', space=sflag, size = 0x4, scoped, tag = 'scoped memory for tpu_custom_call.1']
    #allocation8 [shape = 'u8[8192]{0}', space=vmem, size = 0x2000, scoped, tag = 'input window, operand 2']
    #allocation9 [shape = 'u8[8192]{0}', space=vmem, size = 0x2000, scoped, tag = 'output window, operand 0']
    %8 = vsyncpa [#allocation5], 0
    %9 = vsyncpa [#allocation7], 0
    %10 = vsyncpa [#allocation3], 0
    %s11 = scalar_lea.sflag [#allocation3], 1
    %12 = vsyncpa %s11, 0
    %13 = vsyncpa [#allocation4], 0
    %s14 = scalar_lea.sflag [#allocation4], 1
    %15 = vsyncpa %s14, 0
    loop: start=0, step=1, limit=4
    $region2: #{tpu_custom_call.1} parent=1 // loop_pre_header
      _
    $region3: #{tpu_custom_call.1} parent=1 // loop_header
      %s17 = sphi 0, %s21
      %p18 = scmp.ge.s32.totalorder %s17, 4
      %s24 = sphi 0, %s36
      %s25 = sphi 0, %s32
      %s26 = sphi 0, %s24
      %s27 = sphi 0, %s25
      %s28 = sphi 0, %s26
      %s29 = sphi 0, %s27
      %s37 = sphi 0, %s37
      %s39 = sphi 0, %s37
      %s40 = sphi 0, %s39
      %s54 = sphi 0, %s40
      %s58 = sphi 0, %s58
      %s60 = sphi 0, %s58
      %s61 = sphi 0, %s60
      %s75 = sphi 0, %s61
      %s83 = sphi 0, %s85
      %s86 = sphi 0, %s83
      %s87 = sphi 0, %s86
      %s103 = sphi 0, %s87
      %s111 = sphi 0, %s113
      %s114 = sphi 0, %s111
      %s115 = sphi 0, %s114
      %s131 = sphi 0, %s115
    $region4: #{tpu_custom_call.1} parent=1 // loop_header_branch
      %20 = sbr.rel (%p18) target = $region8
    $region5: #{tpu_custom_call.1} parent=1 // loop_body
      %s22 = ssub.s32 %s17, 1
      %s23 = ssub.s32 %s17, 2
      %s30 = sadd.s32 1, %s25
      %p31 = scmp.ge.s32.totalorder %s30, 1
      %s32 = scalar_select %p31, 0, %s30
      %s33 = sadd.s32 1, %s24
      %s34 = scalar_select %p31, %s33, %s24
      %p35 = scmp.ge.s32.totalorder %s34, 2
      %s36 = scalar_select %p35, 0, %s34
      %s38 = sadd.s32 %s37, 1
      %p41 = scmp.eq.s32.totalorder %s17, 1
      %p42 = scmp.ne.s32.totalorder %s37, %s39
      %p43 = scmp.eq.s32.totalorder %s17, 0
      %p44 = por %p42, %p43
      %p45 = scmp.ne.s32.totalorder %s37, %s39
      %p46 = scmp.eq.s32.totalorder %s22, 1
      %p47 = por %p45, %p46
      %p48 = scmp.ne.s32.totalorder %s39, %s40
      %p49 = scmp.eq.s32.totalorder %s22, 0
      %p50 = por %p48, %p49
      %p51 = scmp.ne.s32.totalorder %s39, %s40
      %p52 = scmp.eq.s32.totalorder %s23, 1
      %p53 = por %p51, %p52
      %p55 = scmp.ne.s32.totalorder %s40, %s54
      %p56 = scmp.eq.s32.totalorder %s23, 0
      %p57 = por %p55, %p56
      %s59 = sadd.s32 %s58, 1
      %p62 = scmp.eq.s32.totalorder %s17, 1
      %p63 = scmp.ne.s32.totalorder %s58, %s60
      %p64 = scmp.eq.s32.totalorder %s17, 0
      %p65 = por %p63, %p64
      %p66 = scmp.ne.s32.totalorder %s58, %s60
      %p67 = scmp.eq.s32.totalorder %s22, 1
      %p68 = por %p66, %p67
      %p69 = scmp.ne.s32.totalorder %s60, %s61
      %p70 = scmp.eq.s32.totalorder %s22, 0
      %p71 = por %p69, %p70
      %p72 = scmp.ne.s32.totalorder %s60, %s61
      %p73 = scmp.eq.s32.totalorder %s23, 1
      %p74 = por %p72, %p73
      %p76 = scmp.ne.s32.totalorder %s61, %s75
      %p77 = scmp.eq.s32.totalorder %s23, 0
      %p78 = por %p76, %p77
      %s79 = ssub.s32 %s24, %s36
      %s80 = ssub.s32 %s25, %s32
      %s81 = sor.u32 %s79, %s80
      %p82 = scmp.eq.s32.totalorder %s81, 0
      %s84 = sadd.s32 %s83, 1
      %s85 = scalar_select %p82, %s83, %s84
      %p88 = pneg %p82
      %p89 = scmp.eq.s32.totalorder %s17, 1
      %p90 = por %p88, %p89
      %p91 = scmp.ne.s32.totalorder %s83, %s86
      %p92 = scmp.eq.s32.totalorder %s17, 0
      %p93 = por %p91, %p92
      %p94 = scmp.ne.s32.totalorder %s83, %s86
      %p95 = scmp.eq.s32.totalorder %s22, 1
      %p96 = por %p94, %p95
      %p97 = scmp.ne.s32.totalorder %s86, %s87
      %p98 = scmp.eq.s32.totalorder %s22, 0
      %p99 = por %p97, %p98
      %p100 = scmp.ne.s32.totalorder %s86, %s87
      %p101 = scmp.eq.s32.totalorder %s23, 1
      %p102 = por %p100, %p101
      %p104 = scmp.ne.s32.totalorder %s87, %s103
      %p105 = scmp.eq.s32.totalorder %s23, 0
      %p106 = por %p104, %p105
      %s107 = ssub.s32 %s24, %s36
      %s108 = ssub.s32 %s25, %s32
      %s109 = sor.u32 %s107, %s108
      %p110 = scmp.eq.s32.totalorder %s109, 0
      %s112 = sadd.s32 %s111, 1
      %s113 = scalar_select %p110, %s111, %s112
      %p116 = pneg %p110
      %p117 = scmp.eq.s32.totalorder %s17, 1
      %p118 = por %p116, %p117
      %p119 = scmp.ne.s32.totalorder %s111, %s114
      %p120 = scmp.eq.s32.totalorder %s17, 0
      %p121 = por %p119, %p120
      %p122 = scmp.ne.s32.totalorder %s111, %s114
      %p123 = scmp.eq.s32.totalorder %s22, 1
      %p124 = por %p122, %p123
      %p125 = scmp.ne.s32.totalorder %s114, %s115
      %p126 = scmp.eq.s32.totalorder %s22, 0
      %p127 = por %p125, %p126
      %p128 = scmp.ne.s32.totalorder %s114, %s115
      %p129 = scmp.eq.s32.totalorder %s23, 1
      %p130 = por %p128, %p129
      %p132 = scmp.ne.s32.totalorder %s115, %s131
      %p133 = scmp.eq.s32.totalorder %s23, 0
      %p134 = por %p132, %p133
      %p135 = scmp.le.s32.totalorder 1, %s17
      %p136 = scmp.lt.s32.totalorder %s17, 3
      %p137 = pnand %p135, %p136
      %p138 = pneg %p137
      // Predicated region
      $region9: #{tpu_custom_call.1} parent=5 // pred_check
        _
      $region10: #{tpu_custom_call.1} parent=5 // pred_check_branch
        %140 = sbr.rel (%p137) target = $region12
      $region11: #{tpu_custom_call.1} parent=5 // pred_region
        %s141 = ssub.s32 %s17, 1
        // Predicated region
        $region13: #{tpu_custom_call.1} parent=11 // pred_check
          %p142 = pneg %p50
        $region14: #{tpu_custom_call.1} parent=11 // pred_check_branch
          %144 = sbr.rel (%p142) target = $region16
        $region15: #{tpu_custom_call.1} parent=11 // pred_region
          %s146 = ssub.s32 64, 64
          %147 = vsyncadd [#allocation5], %s146
          %150 = dma.hbm_to_smem %s0, 64, [#allocation2], [#allocation5]
        $region16: #{tpu_custom_call.1} parent=11 // pred_fallthru
          _
        // Predicated region
        $region17: #{tpu_custom_call.1} parent=11 // pred_check
          %p151 = pneg %p71
        $region18: #{tpu_custom_call.1} parent=11 // pred_check_branch
          %153 = sbr.rel (%p151) target = $region20
        $region19: #{tpu_custom_call.1} parent=11 // pred_region
          %s155 = ssub.s32 16, 16
          %156 = vsyncadd [#allocation7], %s155
          %159 = dma.hbm_to_smem %s1, 16, [#allocation6], [#allocation7]
        $region20: #{tpu_custom_call.1} parent=11 // pred_fallthru
          _
      $region12: #{tpu_custom_call.1} parent=5 // pred_fallthru
        _
      %p160 = scmp.lt.s32.totalorder %s17, 2
      // Predicated region
      $region21: #{tpu_custom_call.1} parent=5 // pred_check
        %p161 = pneg %p160
      $region22: #{tpu_custom_call.1} parent=5 // pred_check_branch
        %163 = sbr.rel (%p161) target = $region24
      $region23: #{tpu_custom_call.1} parent=5 // pred_region
        // Predicated region
        $region25: #{tpu_custom_call.1} parent=23 // pred_check
          %p164 = pneg %p93
        $region26: #{tpu_custom_call.1} parent=23 // pred_check_branch
          %166 = sbr.rel (%p164) target = $region28
        $region27: #{tpu_custom_call.1} parent=23 // pred_region
          %s167 = sand.u32 %s83, 1
          %s168 = scalar_lea.sflag [#allocation3], %s167
          %s169 = sand.u32 %s83, 1
          %s170 = smul.addr %s169, 8
          %s171 = scalar_lea.vmem [#allocation8], %s170
          %s173 = ssub.s32 128, 128
          %174 = vsyncadd %s168, %s173
          %s175 = smul.addr %s24, 4
          %s176 = sadd.s32 %s25, %s175
          %s177 = smul.addr %s176, 32
          %s178 = scalar_lea.hbm %s2, %s177
          %s179 = sshll.u32 %s171, 4
          %s180 = int_to_ptr.vmem [resolvable:$true] %s179
          %185 = dma.hbm_to_vmem [thread:$0]  %s178, 128, %s180, %s168, 32, 32, 2
        $region28: #{tpu_custom_call.1} parent=23 // pred_fallthru
          _
      $region24: #{tpu_custom_call.1} parent=5 // pred_fallthru
        _
      %p186 = scmp.le.s32.totalorder 1, %s17
      %p187 = scmp.lt.s32.totalorder %s17, 3
      %p188 = pnand %p186, %p187
      %p189 = pneg %p188
      // Predicated region
      $region29: #{tpu_custom_call.1} parent=5 // pred_check
        _
      $region30: #{tpu_custom_call.1} parent=5 // pred_check_branch
        %191 = sbr.rel (%p188) target = $region32
      $region31: #{tpu_custom_call.1} parent=5 // pred_region
        %s192 = ssub.s32 %s17, 1
        // Predicated region
        $region33: #{tpu_custom_call.1} parent=31 // pred_check
          %p193 = pneg %p50
        $region34: #{tpu_custom_call.1} parent=31 // pred_check_branch
          %195 = sbr.rel (%p193) target = $region36
        $region35: #{tpu_custom_call.1} parent=31 // pred_region
          %196 = dma.done [#allocation5], 64
        $region36: #{tpu_custom_call.1} parent=31 // pred_fallthru
          _
        // Predicated region
        $region37: #{tpu_custom_call.1} parent=31 // pred_check
          %p197 = pneg %p71
        $region38: #{tpu_custom_call.1} parent=31 // pred_check_branch
          %199 = sbr.rel (%p197) target = $region40
        $region39: #{tpu_custom_call.1} parent=31 // pred_region
          %200 = dma.done [#allocation7], 16
        $region40: #{tpu_custom_call.1} parent=31 // pred_fallthru
          _
        %s201 = sand.u32 %s86, 1
        %s202 = scalar_lea.sflag [#allocation3], %s201
        %s203 = sand.u32 %s86, 1
        %s204 = smul.addr %s203, 8
        %s205 = scalar_lea.vmem [#allocation8], %s204
        // Predicated region
        $region41: #{tpu_custom_call.1} parent=31 // pred_check
          %p206 = pneg %p99
        $region42: #{tpu_custom_call.1} parent=31 // pred_check_branch
          %208 = sbr.rel (%p206) target = $region44
        $region43: #{tpu_custom_call.1} parent=31 // pred_region
          %209 = dma.done %s202, 128
        $region44: #{tpu_custom_call.1} parent=31 // pred_fallthru
          _
        %210 = sfence
        %p211 = pneg %p50
        %p212 = pneg %p47
        %p213 = pneg %p71
        %p214 = pneg %p68
        %s215 = sand.u32 %s86, 1
        %s216 = scalar_lea.sflag [#allocation3], %s215
        %s217 = sand.u32 %s86, 1
        %s218 = smul.addr %s217, 8
        %s219 = scalar_lea.vmem [#allocation8], %s218
        %p220 = pneg %p99
        %p221 = pneg %p96
        %p222 = pneg %p127
        %p223 = pneg %p124
        %s224 = sand.u32 %s114, 1
        %s225 = scalar_lea.sflag [#allocation4], %s224
        %s226 = sand.u32 %s114, 1
        %s227 = smul.addr %s226, 8
        %s228 = scalar_lea.vmem [#allocation9], %s227
        %v229 = vld [vmem:[%s205] sm:$0x3]
        %s230 = sld [smem:[#allocation2]]
        %v231 = vstv %s230
        %v232 = vmul.f32 %v229, %v231
        %s233 = scalar_lea.vmem %s205, 2 [#allocation8]
        %v234 = vld [vmem:[%s233] sm:$0x3]
        %s235 = sld [smem:[#allocation2 + $0x1]]
        %v236 = vstv %s235
        %v237 = vmul.f32 %v234, %v236
        %v238 = vadd.f32 %v232, %v237
        %s239 = scalar_lea.vmem %s205, 4 [#allocation8]
        %v240 = vld [vmem:[%s239] sm:$0x3]
        %s241 = sld [smem:[#allocation2 + $0x2]]
        %v242 = vstv %s241
        %v243 = vmul.f32 %v240, %v242
        %v244 = vadd.f32 %v238, %v243
        %s245 = scalar_lea.vmem %s205, 6 [#allocation8]
        %v246 = vld [vmem:[%s245] sm:$0x3]
        %s247 = sld [smem:[#allocation2 + $0x3]]
        %v248 = vstv %s247
        %v249 = vmul.f32 %v246, %v248
        %v250 = vadd.f32 %v244, %v249
        %s251 = sld [smem:[#allocation6]]
        %v252 = vstv %s251
        %v253 = vadd.f32 %v250, %v252
        %254 = vst [vmem:[%s228] sm:$0x3] %v253
        %v255 = vld [vmem:[%s205] sm:$0x3]
        %s256 = sld [smem:[#allocation2 + $0x80]]
        %v257 = vstv %s256
        %v258 = vmul.f32 %v255, %v257
        %v259 = vld [vmem:[%s233] sm:$0x3]
        %s260 = sld [smem:[#allocation2 + $0x81]]
        %v261 = vstv %s260
        %v262 = vmul.f32 %v259, %v261
        %v263 = vadd.f32 %v258, %v262
        %v264 = vld [vmem:[%s239] sm:$0x3]
        %s265 = sld [smem:[#allocation2 + $0x82]]
        %v266 = vstv %s265
        %v267 = vmul.f32 %v264, %v266
        %v268 = vadd.f32 %v263, %v267
        %v269 = vld [vmem:[%s245] sm:$0x3]
        %s270 = sld [smem:[#allocation2 + $0x83]]
        %v271 = vstv %s270
        %v272 = vmul.f32 %v269, %v271
        %v273 = vadd.f32 %v268, %v272
        %s274 = sld [smem:[#allocation6 + $0x1]]
        %v275 = vstv %s274
        %v276 = vadd.f32 %v273, %v275
        %s277 = scalar_lea.vmem %s228, 2 [#allocation9]
        %278 = vst [vmem:[%s277] sm:$0x3] %v276
        %v279 = vld [vmem:[%s205] sm:$0x3]
        %s280 = sld [smem:[#allocation2 + $0x100]]
        %v281 = vstv %s280
        %v282 = vmul.f32 %v279, %v281
        %v283 = vld [vmem:[%s233] sm:$0x3]
        %s284 = sld [smem:[#allocation2 + $0x101]]
        %v285 = vstv %s284
        %v286 = vmul.f32 %v283, %v285
        %v287 = vadd.f32 %v282, %v286
        %v288 = vld [vmem:[%s239] sm:$0x3]
        %s289 = sld [smem:[#allocation2 + $0x102]]
        %v290 = vstv %s289
        %v291 = vmul.f32 %v288, %v290
        %v292 = vadd.f32 %v287, %v291
        %v293 = vld [vmem:[%s245] sm:$0x3]
        %s294 = sld [smem:[#allocation2 + $0x103]]
        %v295 = vstv %s294
        %v296 = vmul.f32 %v293, %v295
        %v297 = vadd.f32 %v292, %v296
        %s298 = sld [smem:[#allocation6 + $0x2]]
        %v299 = vstv %s298
        %v300 = vadd.f32 %v297, %v299
        %s301 = scalar_lea.vmem %s228, 4 [#allocation9]
        %302 = vst [vmem:[%s301] sm:$0x3] %v300
        %v303 = vld [vmem:[%s205] sm:$0x3]
        %s304 = sld [smem:[#allocation2 + $0x180]]
        %v305 = vstv %s304
        %v306 = vmul.f32 %v303, %v305
        %v307 = vld [vmem:[%s233] sm:$0x3]
        %s308 = sld [smem:[#allocation2 + $0x181]]
        %v309 = vstv %s308
        %v310 = vmul.f32 %v307, %v309
        %v311 = vadd.f32 %v306, %v310
        %v312 = vld [vmem:[%s239] sm:$0x3]
        %s313 = sld [smem:[#allocation2 + $0x182]]
        %v314 = vstv %s313
        %v315 = vmul.f32 %v312, %v314
        %v316 = vadd.f32 %v311, %v315
        %v317 = vld [vmem:[%s245] sm:$0x3]
        %s318 = sld [smem:[#allocation2 + $0x183]]
        %v319 = vstv %s318
        %v320 = vmul.f32 %v317, %v319
        %v321 = vadd.f32 %v316, %v320
        %s322 = sld [smem:[#allocation6 + $0x3]]
        %v323 = vstv %s322
        %v324 = vadd.f32 %v321, %v323
        %s325 = scalar_lea.vmem %s228, 6 [#allocation9]
        %326 = vst [vmem:[%s325] sm:$0x3] %v324
        %s327 = sand.u32 %s114, 1
        %s328 = scalar_lea.sflag [#allocation4], %s327
        %s329 = sand.u32 %s114, 1
        %s330 = smul.addr %s329, 8
        %s331 = scalar_lea.vmem [#allocation9], %s330
        // Predicated region
        $region45: #{tpu_custom_call.1} parent=31 // pred_check
          %p332 = pneg %p124
        $region46: #{tpu_custom_call.1} parent=31 // pred_check_branch
          %334 = sbr.rel (%p332) target = $region48
        $region47: #{tpu_custom_call.1} parent=31 // pred_region
          %s336 = ssub.s32 128, 128
          %337 = vsyncadd %s328, %s336
          %s338 = smul.addr %s26, 4
          %s339 = sadd.s32 %s27, %s338
          %s340 = smul.addr %s339, 32
          %s341 = scalar_lea.hbm %s3, %s340
          %s342 = sshll.u32 %s331, 4
          %s343 = int_to_ptr.vmem [resolvable:$true] %s342
          %348 = dma.vmem_to_hbm [thread:$0]  %s343, 128, %s341, %s328, 32, 32, 2
        $region48: #{tpu_custom_call.1} parent=31 // pred_fallthru
          _
      $region32: #{tpu_custom_call.1} parent=5 // pred_fallthru
        _
      %p349 = scmp.le.s32.totalorder 2, %s17
      // Predicated region
      $region49: #{tpu_custom_call.1} parent=5 // pred_check
        %p350 = pneg %p349
      $region50: #{tpu_custom_call.1} parent=5 // pred_check_branch
        %352 = sbr.rel (%p350) target = $region52
      $region51: #{tpu_custom_call.1} parent=5 // pred_region
        %s353 = ssub.s32 %s17, 2
        // Predicated region
        $region53: #{tpu_custom_call.1} parent=51 // pred_check
          %p354 = pneg %p130
        $region54: #{tpu_custom_call.1} parent=51 // pred_check_branch
          %356 = sbr.rel (%p354) target = $region56
        $region55: #{tpu_custom_call.1} parent=51 // pred_region
          %s357 = sand.u32 %s115, 1
          %s358 = scalar_lea.sflag [#allocation4], %s357
          %s359 = sand.u32 %s115, 1
          %s360 = smul.addr %s359, 8
          %s361 = scalar_lea.vmem [#allocation9], %s360
          %362 = dma.done %s358, 128
        $region56: #{tpu_custom_call.1} parent=51 // pred_fallthru
          _
      $region52: #{tpu_custom_call.1} parent=5 // pred_fallthru
        _
    $region6: #{tpu_custom_call.1} parent=1 // loop_footer
      %s21 = sadd.s32 1, %s17
    $region7: #{tpu_custom_call.1} parent=1 // loop_footer_branch
      %16 = sbr.rel target = $region3
    $region8: #{tpu_custom_call.1} parent=1 // loop_exit
      _
    %363 = vsyncpa [#allocation3], 1
    %s364 = scalar_lea.sflag [#allocation3], 1
    %365 = vsyncpa %s364, 1
    %366 = vsyncpa [#allocation4], 1
    %s367 = scalar_lea.sflag [#allocation4], 1
    %368 = vsyncpa %s367, 1
    %369 = vsyncpa [#allocation5], 1
    %s370 = scalar_lea.sflag [#allocation5], 1
    %371 = vsyncpa %s370, 1
    %372 = vsyncpa [#allocation7], 1

</llo_original>
